<compile_context>
chip_gen: v7x
topology: tpu7x:2x2x1
jax: 0.10.0
libtpu: 0.0.40
codegen_flags: <defaults>
</compile_context>

<pallas_src>
import jax
import jax.numpy as jnp
from jax import lax
from jax.experimental import pallas as pl
from jax.experimental.pallas import tpu as pltpu

INPUT_DIM = 2
N_ACTIONS = 4
HIDDEN = 256
PROB_UNIFORM = 0.01
HEAD_W = 8          # fused head width: [logits(4) | v(1) | pad(3)]
TB = 512            # batch tile (multiple of 128; 512-2048 all fit VMEM)


def _network_kernel(x_ref, w1_ref, b1_ref,
                    pw2_ref, pb2_ref, vw2_ref, vb2_ref,
                    w3_ref, b3_ref, out_ref):
    x = x_ref[...]                                    # (TB, 2) f32

    # Fused first layer (policy | value). K=2 contraction as a VPU outer
    # product: an MXU dot would pad K to a full tile for ~0 useful MACs.
    w1 = w1_ref[...]                                  # (2, 512) f32, norm folded
    act1 = (x[:, 0:1] * w1[0:1, :] +
            x[:, 1:2] * w1[1:2, :] + b1_ref[...])     # (TB, 512)
    a1 = jnp.maximum(act1, 0.0).astype(jnp.bfloat16)

    # Layer 2: two lane-dense 256x256 bf16 matmuls, f32 accumulation.
    h2 = jnp.dot(a1[:, :HIDDEN], pw2_ref[...],
                 preferred_element_type=jnp.float32) + pb2_ref[...]
    g2 = jnp.dot(a1[:, HIDDEN:], vw2_ref[...],
                 preferred_element_type=jnp.float32) + vb2_ref[...]
    hg = jnp.concatenate([jnp.maximum(h2, 0.0), jnp.maximum(g2, 0.0)],
                         axis=-1).astype(jnp.bfloat16)  # (TB, 512)

    # Fused block-diagonal head: (TB,512) @ (512,8) -> cols 0:4 logits, col 4 v.
    head = jnp.dot(hg, w3_ref[...],
                   preferred_element_type=jnp.float32) + b3_ref[...]   # (TB, 8)

    # Masked softmax over the logit lanes + uniform mix; v lane passes through.
    col = lax.broadcasted_iota(jnp.int32, head.shape, 1)
    is_logit = col < N_ACTIONS
    z = jnp.where(is_logit, head, -jnp.inf)
    m = jnp.max(z, axis=-1, keepdims=True)
    e = jnp.exp(z - m)                                # masked lanes -> 0
    s = jnp.sum(e, axis=-1, keepdims=True)
    probs = e * pl.reciprocal(s, approx=True)
    mixed = probs * (1.0 - PROB_UNIFORM) + (PROB_UNIFORM / N_ACTIONS)

    # Single full-width store of the fused output slab.
    out_ref[...] = jnp.where(is_logit, mixed, head)


@jax.jit
def network_forward(x, params):
    """x: (B, INPUT_DIM) f32 -> (v: (B,1) f32, final_probs: (B, N_ACTIONS) f32)."""
    B = x.shape[0]

    # Fold the running-stat normalization into the fused first layer.
    mean = params["running_mean"]                     # (1, 2)
    sqm = params["running_sq_mean"]                   # (1, 2)
    std = jnp.sqrt(jnp.maximum(sqm - mean * mean, 0.0)) + 1e-6
    inv_std = 1.0 / std

    w1 = jnp.concatenate([params["pw1"], params["vw1"]], axis=1)   # (2, 512)
    b1 = jnp.concatenate([params["pb1"], params["vb1"]], axis=1)   # (1, 512)
    w1_eff = w1 * inv_std.reshape(INPUT_DIM, 1)
    b1_eff = b1 - jnp.dot(mean * inv_std, w1)

    pw2 = params["pw2"].astype(jnp.bfloat16)
    vw2 = params["vw2"].astype(jnp.bfloat16)
    pb2 = params["pb2"]
    vb2 = params["vb2"]

    # Block-diagonal fused head weight/bias (zero-padded to HEAD_W lanes).
    w3 = jnp.zeros((2 * HIDDEN, HEAD_W), jnp.float32)
    w3 = w3.at[:HIDDEN, :N_ACTIONS].set(params["pw3"])
    w3 = w3.at[HIDDEN:, N_ACTIONS].set(params["vw3"][:, 0])
    w3 = w3.astype(jnp.bfloat16)
    b3 = jnp.zeros((1, HEAD_W), jnp.float32)
    b3 = b3.at[:, :N_ACTIONS].set(params["pb3"])
    b3 = b3.at[:, N_ACTIONS].set(params["vb3"][0, 0])

    # Batch tiling (pad B up so the sublane dim of every block is 8-aligned).
    b8 = max(8, -(-B // 8) * 8)
    tb = min(TB, b8)
    bp = -(-b8 // tb) * tb
    xp = x if bp == B else jnp.pad(x, ((0, bp - B), (0, 0)))
    grid = (bp // tb,)

    const2 = lambda i: (0, 0)
    flops = 2 * bp * (INPUT_DIM * 2 * HIDDEN + 2 * HIDDEN * HIDDEN
                      + 2 * HIDDEN * HEAD_W)
    weight_bytes = ((w1_eff.size + b1_eff.size + pb2.size + vb2.size
                     + b3.size) * 4 + (pw2.size + vw2.size + w3.size) * 2)
    cost = pl.CostEstimate(
        flops=int(flops),
        transcendentals=int(bp * (HEAD_W + 1)),
        bytes_accessed=int(xp.size * 4 + bp * HEAD_W * 4 + weight_bytes))

    out = pl.pallas_call(
        _network_kernel,
        out_shape=jax.ShapeDtypeStruct((bp, HEAD_W), jnp.float32),
        grid=grid,
        in_specs=[
            pl.BlockSpec((tb, INPUT_DIM), lambda i: (i, 0)),   # x (streamed)
            pl.BlockSpec((INPUT_DIM, 2 * HIDDEN), const2),     # w1 (resident)
            pl.BlockSpec((1, 2 * HIDDEN), const2),             # b1
            pl.BlockSpec((HIDDEN, HIDDEN), const2),            # pw2
            pl.BlockSpec((1, HIDDEN), const2),                 # pb2
            pl.BlockSpec((HIDDEN, HIDDEN), const2),            # vw2
            pl.BlockSpec((1, HIDDEN), const2),                 # vb2
            pl.BlockSpec((2 * HIDDEN, HEAD_W), const2),        # w3
            pl.BlockSpec((1, HEAD_W), const2),                 # b3
        ],
        out_specs=pl.BlockSpec((tb, HEAD_W), lambda i: (i, 0)),
        compiler_params=pltpu.CompilerParams(
            dimension_semantics=("parallel",)),
        cost_estimate=cost,
    )(xp, w1_eff, b1_eff, pw2, pb2, vw2, vb2, w3, b3)

    v = out[:B, N_ACTIONS:N_ACTIONS + 1]
    final_probs = out[:B, :N_ACTIONS]
    return v, final_probs


def init_params(key):
    """PyTorch-Linear-style init: U(-1/sqrt(fan_in), 1/sqrt(fan_in)).

    Weights stored as (in_features, out_features); biases / running stats as
    (1, dim) rows for TPU-friendly 2D layouts.
    """
    def linear(k, fan_in, fan_out):
        kw, kb = jax.random.split(k)
        bound = 1.0 / (fan_in ** 0.5)
        w = jax.random.uniform(kw, (fan_in, fan_out), jnp.float32, -bound, bound)
        b = jax.random.uniform(kb, (1, fan_out), jnp.float32, -bound, bound)
        return w, b

    keys = jax.random.split(key, 6)
    pw1, pb1 = linear(keys[0], INPUT_DIM, HIDDEN)
    pw2, pb2 = linear(keys[1], HIDDEN, HIDDEN)
    pw3, pb3 = linear(keys[2], HIDDEN, N_ACTIONS)
    vw1, vb1 = linear(keys[3], INPUT_DIM, HIDDEN)
    vw2, vb2 = linear(keys[4], HIDDEN, HIDDEN)
    vw3, vb3 = linear(keys[5], HIDDEN, 1)

    return {
        "pw1": pw1, "pb1": pb1, "pw2": pw2, "pb2": pb2, "pw3": pw3, "pb3": pb3,
        "vw1": vw1, "vb1": vb1, "vw2": vw2, "vb2": vb2, "vw3": vw3, "vb3": vb3,
        # registered buffers (persistent): zeros / ones as in __init__
        "running_mean": jnp.zeros((1, INPUT_DIM), jnp.float32),
        "running_sq_mean": jnp.ones((1, INPUT_DIM), jnp.float32),
    }


def _ref_forward(x, p):
    """Pure-JAX reference of the PyTorch forward (training mode)."""
    std = jnp.sqrt(p["running_sq_mean"] - p["running_mean"] ** 2) + 1e-6
    xn = (x - p["running_mean"]) / std
    hp = jnp.maximum(xn @ p["pw1"] + p["pb1"], 0.0)
    hp = jnp.maximum(hp @ p["pw2"] + p["pb2"], 0.0)
    logits = hp @ p["pw3"] + p["pb3"]
    hv = jnp.maximum(xn @ p["vw1"] + p["vb1"], 0.0)
    hv = jnp.maximum(hv @ p["vw2"] + p["vb2"], 0.0)
    v = hv @ p["vw3"] + p["vb3"]
    probs = jax.nn.softmax(logits, axis=-1)
    return v, probs * (1.0 - PROB_UNIFORM) + PROB_UNIFORM / N_ACTIONS


if __name__ == "__main__":
    key = jax.random.PRNGKey(0)
    k_params, k_x = jax.random.split(key)

    params = init_params(k_params)
    batch = 8
    x = jax.random.normal(k_x, (batch, INPUT_DIM), jnp.float32)

    v, final_probs = network_forward(x, params)
    jax.block_until_ready((v, final_probs))

    v_ref, p_ref = _ref_forward(x, params)

    assert v.shape == (batch, 1)
    assert final_probs.shape == (batch, N_ACTIONS)
    assert bool(jnp.all(jnp.isfinite(v))) and bool(jnp.all(jnp.isfinite(final_probs)))
    # simplex preserved (loose tol: approx reciprocal + bf16 weights)
    assert bool(jnp.all(jnp.abs(jnp.sum(final_probs, axis=-1) - 1.0) < 5e-3))
    assert bool(jnp.max(jnp.abs(final_probs - p_ref)) < 5e-2)
    assert bool(jnp.max(jnp.abs(v - v_ref)) < 5e-2)

    print("KERNEL_OK")
</pallas_src>

<mosaic_0001>
module attributes {stable_mosaic.version = 11 : i64} {
  func.func @_network_kernel(%arg0: i32, %arg1: memref<8x2xf32, #tpu.memory_space<vmem>>, %arg2: memref<2x512xf32, #tpu.memory_space<vmem>>, %arg3: memref<1x512xf32, #tpu.memory_space<vmem>>, %arg4: memref<256x256xbf16, #tpu.memory_space<vmem>>, %arg5: memref<1x256xf32, #tpu.memory_space<vmem>>, %arg6: memref<256x256xbf16, #tpu.memory_space<vmem>>, %arg7: memref<1x256xf32, #tpu.memory_space<vmem>>, %arg8: memref<512x8xbf16, #tpu.memory_space<vmem>>, %arg9: memref<1x8xf32, #tpu.memory_space<vmem>>, %arg10: memref<8x8xf32, #tpu.memory_space<vmem>>) attributes {dimension_semantics = [#tpu.dimension_semantics<parallel>], iteration_bounds = array<i64: 1>, scalar_prefetch = 0 : i64, scratch_operands = 0 : i64, tpu.core_type = #tpu.core_type<tc>, window_params = [{transform_indices = @transform_0, window_bounds = array<i64: 8, 2>}, {pipeline_mode = #tpu.pipeline_mode<synchronous>, transform_indices = @transform_1, window_bounds = array<i64: 2, 512>}, {pipeline_mode = #tpu.pipeline_mode<synchronous>, transform_indices = @transform_2, window_bounds = array<i64: 1, 512>}, {pipeline_mode = #tpu.pipeline_mode<synchronous>, transform_indices = @transform_3, window_bounds = array<i64: 256, 256>}, {pipeline_mode = #tpu.pipeline_mode<synchronous>, transform_indices = @transform_4, window_bounds = array<i64: 1, 256>}, {pipeline_mode = #tpu.pipeline_mode<synchronous>, transform_indices = @transform_5, window_bounds = array<i64: 256, 256>}, {pipeline_mode = #tpu.pipeline_mode<synchronous>, transform_indices = @transform_6, window_bounds = array<i64: 1, 256>}, {pipeline_mode = #tpu.pipeline_mode<synchronous>, transform_indices = @transform_7, window_bounds = array<i64: 512, 8>}, {pipeline_mode = #tpu.pipeline_mode<synchronous>, transform_indices = @transform_8, window_bounds = array<i64: 1, 8>}, {transform_indices = @transform_9, window_bounds = array<i64: 8, 8>}]} {
    %c0 = arith.constant 0 : index
    %c0_0 = arith.constant 0 : index
    %0 = vector.load %arg1[%c0, %c0_0] : memref<8x2xf32, #tpu.memory_space<vmem>>, vector<8x2xf32>
    %c0_1 = arith.constant 0 : index
    %c0_2 = arith.constant 0 : index
    %1 = vector.load %arg2[%c0_1, %c0_2] : memref<2x512xf32, #tpu.memory_space<vmem>>, vector<2x512xf32>
    %2 = vector.extract_strided_slice %0 {offsets = [0, 0], sizes = [8, 1], strides = [1, 1]} : vector<8x2xf32> to vector<8x1xf32>
    %3 = vector.extract_strided_slice %1 {offsets = [0, 0], sizes = [1, 512], strides = [1, 1]} : vector<2x512xf32> to vector<1x512xf32>
    %4 = vector.broadcast %2 : vector<8x1xf32> to vector<8x512xf32>
    %5 = vector.broadcast %3 : vector<1x512xf32> to vector<8x512xf32>
    %6 = arith.mulf %4, %5 : vector<8x512xf32>
    %7 = vector.extract_strided_slice %0 {offsets = [0, 1], sizes = [8, 1], strides = [1, 1]} : vector<8x2xf32> to vector<8x1xf32>
    %8 = vector.extract_strided_slice %1 {offsets = [1, 0], sizes = [1, 512], strides = [1, 1]} : vector<2x512xf32> to vector<1x512xf32>
    %9 = vector.broadcast %7 : vector<8x1xf32> to vector<8x512xf32>
    %10 = vector.broadcast %8 : vector<1x512xf32> to vector<8x512xf32>
    %11 = arith.mulf %9, %10 : vector<8x512xf32>
    %12 = arith.addf %6, %11 : vector<8x512xf32>
    %c0_3 = arith.constant 0 : index
    %c0_4 = arith.constant 0 : index
    %13 = vector.load %arg3[%c0_3, %c0_4] : memref<1x512xf32, #tpu.memory_space<vmem>>, vector<1x512xf32>
    %14 = vector.broadcast %13 : vector<1x512xf32> to vector<8x512xf32>
    %15 = arith.addf %12, %14 : vector<8x512xf32>
    %cst = arith.constant 0.000000e+00 : f32
    %16 = vector.broadcast %cst : f32 to vector<8x512xf32>
    %17 = arith.maximumf %15, %16 : vector<8x512xf32>
    %18 = arith.truncf %17 : vector<8x512xf32> to vector<8x512xbf16>
    %19 = vector.extract_strided_slice %18 {offsets = [0, 0], sizes = [8, 256], strides = [1, 1]} : vector<8x512xbf16> to vector<8x256xbf16>
    %c0_5 = arith.constant 0 : index
    %c0_6 = arith.constant 0 : index
    %20 = vector.load %arg4[%c0_5, %c0_6] : memref<256x256xbf16, #tpu.memory_space<vmem>>, vector<256x256xbf16>
    %cst_7 = arith.constant dense<0.000000e+00> : vector<8x256xf32>
    %21 = tpu.matmul %19, %20, %cst_7 {dimension_numbers = #tpu.dot_dimension_numbers<[1], [0], [0], [1], [0, 0, 1, 1], [], []>} : vector<8x256xbf16>, vector<256x256xbf16>, vector<8x256xf32> -> vector<8x256xf32>
    %c0_8 = arith.constant 0 : index
    %c0_9 = arith.constant 0 : index
    %22 = vector.load %arg5[%c0_8, %c0_9] : memref<1x256xf32, #tpu.memory_space<vmem>>, vector<1x256xf32>
    %23 = vector.broadcast %22 : vector<1x256xf32> to vector<8x256xf32>
    %24 = arith.addf %21, %23 : vector<8x256xf32>
    %25 = vector.extract_strided_slice %18 {offsets = [0, 256], sizes = [8, 256], strides = [1, 1]} : vector<8x512xbf16> to vector<8x256xbf16>
    %c0_10 = arith.constant 0 : index
    %c0_11 = arith.constant 0 : index
    %26 = vector.load %arg6[%c0_10, %c0_11] : memref<256x256xbf16, #tpu.memory_space<vmem>>, vector<256x256xbf16>
    %cst_12 = arith.constant dense<0.000000e+00> : vector<8x256xf32>
    %27 = tpu.matmul %25, %26, %cst_12 {dimension_numbers = #tpu.dot_dimension_numbers<[1], [0], [0], [1], [0, 0, 1, 1], [], []>} : vector<8x256xbf16>, vector<256x256xbf16>, vector<8x256xf32> -> vector<8x256xf32>
    %c0_13 = arith.constant 0 : index
    %c0_14 = arith.constant 0 : index
    %28 = vector.load %arg7[%c0_13, %c0_14] : memref<1x256xf32, #tpu.memory_space<vmem>>, vector<1x256xf32>
    %29 = vector.broadcast %28 : vector<1x256xf32> to vector<8x256xf32>
    %30 = arith.addf %27, %29 : vector<8x256xf32>
    %cst_15 = arith.constant 0.000000e+00 : f32
    %31 = vector.broadcast %cst_15 : f32 to vector<8x256xf32>
    %32 = arith.maximumf %24, %31 : vector<8x256xf32>
    %cst_16 = arith.constant 0.000000e+00 : f32
    %33 = vector.broadcast %cst_16 : f32 to vector<8x256xf32>
    %34 = arith.maximumf %30, %33 : vector<8x256xf32>
    %35 = tpu.concatenate %32, %34 in 1 : vector<8x256xf32>, vector<8x256xf32> -> vector<8x512xf32>
    %36 = arith.truncf %35 : vector<8x512xf32> to vector<8x512xbf16>
    %c0_17 = arith.constant 0 : index
    %c0_18 = arith.constant 0 : index
    %37 = vector.load %arg8[%c0_17, %c0_18] : memref<512x8xbf16, #tpu.memory_space<vmem>>, vector<512x8xbf16>
    %cst_19 = arith.constant dense<0.000000e+00> : vector<8x8xf32>
    %38 = tpu.matmul %36, %37, %cst_19 {dimension_numbers = #tpu.dot_dimension_numbers<[1], [0], [0], [1], [0, 0, 1, 1], [], []>} : vector<8x512xbf16>, vector<512x8xbf16>, vector<8x8xf32> -> vector<8x8xf32>
    %c0_20 = arith.constant 0 : index
    %c0_21 = arith.constant 0 : index
    %39 = vector.load %arg9[%c0_20, %c0_21] : memref<1x8xf32, #tpu.memory_space<vmem>>, vector<1x8xf32>
    %40 = vector.broadcast %39 : vector<1x8xf32> to vector<8x8xf32>
    %41 = arith.addf %38, %40 : vector<8x8xf32>
    %42 = tpu.iota {dimensions = array<i32: 1>} : vector<8x8xi32>
    %c4_i32 = arith.constant 4 : i32
    %43 = vector.broadcast %c4_i32 : i32 to vector<8x8xi32>
    %44 = arith.cmpi slt, %42, %43 : vector<8x8xi32>
    %cst_22 = arith.constant 0xFF800000 : f32
    %45 = vector.broadcast %cst_22 : f32 to vector<8x8xf32>
    %46 = arith.select %44, %41, %45 : vector<8x8xi1>, vector<8x8xf32>
    %cst_23 = arith.constant dense<0xFF800000> : vector<8xf32>
    %47 = vector.multi_reduction <maximumf>, %46, %cst_23 [1] : vector<8x8xf32> to vector<8xf32>
    %48 = vector.shape_cast %47 : vector<8xf32> to vector<8x1xf32>
    %49 = vector.broadcast %48 : vector<8x1xf32> to vector<8x8xf32>
    %50 = arith.subf %46, %49 : vector<8x8xf32>
    %51 = math.exp %50 : vector<8x8xf32>
    %cst_24 = arith.constant dense<0.000000e+00> : vector<8xf32>
    %52 = vector.multi_reduction <add>, %51, %cst_24 [1] : vector<8x8xf32> to vector<8xf32>
    %53 = vector.shape_cast %52 : vector<8xf32> to vector<8x1xf32>
    %54 = tpu.reciprocal %53 {approx = true} : vector<8x1xf32> -> vector<8x1xf32>
    %55 = vector.broadcast %54 : vector<8x1xf32> to vector<8x8xf32>
    %56 = arith.mulf %51, %55 : vector<8x8xf32>
    %cst_25 = arith.constant 9.900000e-01 : f32
    %57 = vector.broadcast %cst_25 : f32 to vector<8x8xf32>
    %58 = arith.mulf %56, %57 : vector<8x8xf32>
    %cst_26 = arith.constant 2.500000e-03 : f32
    %59 = vector.broadcast %cst_26 : f32 to vector<8x8xf32>
    %60 = arith.addf %58, %59 : vector<8x8xf32>
    %61 = arith.select %44, %60, %41 : vector<8x8xi1>, vector<8x8xf32>
    %c0_27 = arith.constant 0 : index
    %c0_28 = arith.constant 0 : index
    %62 = vector.load %arg10[%c0_27, %c0_28] : memref<8x8xf32, #tpu.memory_space<vmem>>, vector<8x8xf32>
    tpu.vector_store %arg10[%c0_27, %c0_28], %61 {strides = array<i32>} : memref<8x8xf32, #tpu.memory_space<vmem>>, vector<8x8xf32>,
    return
  }
  func.func @transform_0(%arg0: i32) -> (i32, i32) {
    %c0_i32 = arith.constant 0 : i32
    %c0_i32_0 = arith.constant 0 : i32
    return %arg0, %c0_i32 : i32, i32
  }
  func.func @transform_1(%arg0: i32) -> (i32, i32) {
    %c0_i32 = arith.constant 0 : i32
    %c0_i32_0 = arith.constant 0 : i32
    %c0_i32_1 = arith.constant 0 : i32
    return %c0_i32, %c0_i32_0 : i32, i32
  }
  func.func @transform_2(%arg0: i32) -> (i32, i32) {
    %c0_i32 = arith.constant 0 : i32
    %c0_i32_0 = arith.constant 0 : i32
    %c0_i32_1 = arith.constant 0 : i32
    return %c0_i32, %c0_i32_0 : i32, i32
  }
  func.func @transform_3(%arg0: i32) -> (i32, i32) {
    %c0_i32 = arith.constant 0 : i32
    %c0_i32_0 = arith.constant 0 : i32
    %c0_i32_1 = arith.constant 0 : i32
    return %c0_i32, %c0_i32_0 : i32, i32
  }
  func.func @transform_4(%arg0: i32) -> (i32, i32) {
    %c0_i32 = arith.constant 0 : i32
    %c0_i32_0 = arith.constant 0 : i32
    %c0_i32_1 = arith.constant 0 : i32
    return %c0_i32, %c0_i32_0 : i32, i32
  }
  func.func @transform_5(%arg0: i32) -> (i32, i32) {
    %c0_i32 = arith.constant 0 : i32
    %c0_i32_0 = arith.constant 0 : i32
    %c0_i32_1 = arith.constant 0 : i32
    return %c0_i32, %c0_i32_0 : i32, i32
  }
  func.func @transform_6(%arg0: i32) -> (i32, i32) {
    %c0_i32 = arith.constant 0 : i32
    %c0_i32_0 = arith.constant 0 : i32
    %c0_i32_1 = arith.constant 0 : i32
    return %c0_i32, %c0_i32_0 : i32, i32
  }
  func.func @transform_7(%arg0: i32) -> (i32, i32) {
    %c0_i32 = arith.constant 0 : i32
    %c0_i32_0 = arith.constant 0 : i32
    %c0_i32_1 = arith.constant 0 : i32
    return %c0_i32, %c0_i32_0 : i32, i32
  }
  func.func @transform_8(%arg0: i32) -> (i32, i32) {
    %c0_i32 = arith.constant 0 : i32
    %c0_i32_0 = arith.constant 0 : i32
    %c0_i32_1 = arith.constant 0 : i32
    return %c0_i32, %c0_i32_0 : i32, i32
  }
  func.func @transform_9(%arg0: i32) -> (i32, i32) {
    %c0_i32 = arith.constant 0 : i32
    %c0_i32_0 = arith.constant 0 : i32
    return %arg0, %c0_i32 : i32, i32
  }
}

</mosaic_0001>

<llo_original>
// kernel: network_forward.1
$region0: #{network_forward.1}
  #allocation0 [shape = 'u32[]', space=smem, size = 0x4, offset = 0x4, fixed_abs, tag = 'smem constant byte address 0x4 - core index']
  #allocation1 [shape = 'u32[144,128]{1,0:T(1,128)}', space=vmem, size = 0x12000, scoped, tag = 'internal scratch']
  %s0 = inlined_call_operand.vmem [shape: f32[8,2], index: 0, kind: input, shape index: {}]
  %s1 = inlined_call_operand.vmem [shape: f32[2,512], index: 1, kind: input, shape index: {}]
  %s2 = inlined_call_operand.vmem [shape: f32[1,512], index: 2, kind: input, shape index: {}]
  %s3 = inlined_call_operand.vmem [shape: bf16[256,256], index: 3, kind: input, shape index: {}]
  %s4 = inlined_call_operand.vmem [shape: f32[1,256], index: 4, kind: input, shape index: {}]
  %s5 = inlined_call_operand.vmem [shape: bf16[256,256], index: 5, kind: input, shape index: {}]
  %s6 = inlined_call_operand.vmem [shape: f32[1,256], index: 6, kind: input, shape index: {}]
  %s7 = inlined_call_operand.vmem [shape: bf16[512,8], index: 7, kind: input, shape index: {}]
  %s8 = inlined_call_operand.vmem [shape: f32[1,8], index: 8, kind: input, shape index: {}]
  %s9 = inlined_call_operand.vmem [shape: f32[8,8], index: 9, kind: output, shape index: {}]
  %s10 = sld [smem:[#allocation0]]
  $region46: #{network_forward.1} parent=0
    _
  %s12 = ssub.s32 1, %s10
  %s13 = scalar_select 0, %s12, %s10
  // Predicated region
  $region2: #{network_forward.1} parent=0 // pred_check
    _
  $region3: #{network_forward.1} parent=0 // pred_check_branch
    %15 = sbr.rel (0) target = $region5
  $region4: #{network_forward.1} parent=0 // pred_region
    _
  $region5: #{network_forward.1} parent=0 // pred_fallthru
    _
  // Predicated region
  $region6: #{network_forward.1} parent=0 // pred_check
    _
  $region7: #{network_forward.1} parent=0 // pred_check_branch
    %17 = sbr.rel (0) target = $region9
  $region8: #{network_forward.1} parent=0 // pred_region
    _
  $region9: #{network_forward.1} parent=0 // pred_fallthru
    _
  // Predicated region
  $region10: #{network_forward.1} parent=0 // pred_check
    _
  $region11: #{network_forward.1} parent=0 // pred_check_branch
    %19 = sbr.rel (0) target = $region13
  $region12: #{network_forward.1} parent=0 // pred_region
    _
  $region13: #{network_forward.1} parent=0 // pred_fallthru
    _
  // Predicated region
  $region14: #{network_forward.1} parent=0 // pred_check
    _
  $region15: #{network_forward.1} parent=0 // pred_check_branch
    %21 = sbr.rel (0) target = $region17
  $region16: #{network_forward.1} parent=0 // pred_region
    _
  $region17: #{network_forward.1} parent=0 // pred_fallthru
    _
  // Predicated region
  $region18: #{network_forward.1} parent=0 // pred_check
    _
  $region19: #{network_forward.1} parent=0 // pred_check_branch
    %23 = sbr.rel (0) target = $region21
  $region20: #{network_forward.1} parent=0 // pred_region
    _
  $region21: #{network_forward.1} parent=0 // pred_fallthru
    _
  // Predicated region
  $region22: #{network_forward.1} parent=0 // pred_check
    _
  $region23: #{network_forward.1} parent=0 // pred_check_branch
    %25 = sbr.rel (0) target = $region25
  $region24: #{network_forward.1} parent=0 // pred_region
    _
  $region25: #{network_forward.1} parent=0 // pred_fallthru
    _
  // Predicated region
  $region26: #{network_forward.1} parent=0 // pred_check
    _
  $region27: #{network_forward.1} parent=0 // pred_check_branch
    %27 = sbr.rel (0) target = $region29
  $region28: #{network_forward.1} parent=0 // pred_region
    _
  $region29: #{network_forward.1} parent=0 // pred_fallthru
    _
  // Predicated region
  $region30: #{network_forward.1} parent=0 // pred_check
    _
  $region31: #{network_forward.1} parent=0 // pred_check_branch
    %29 = sbr.rel (0) target = $region33
  $region32: #{network_forward.1} parent=0 // pred_region
    _
  $region33: #{network_forward.1} parent=0 // pred_fallthru
    _
  // Predicated region
  $region34: #{network_forward.1} parent=0 // pred_check
    _
  $region35: #{network_forward.1} parent=0 // pred_check_branch
    %31 = sbr.rel (0) target = $region37
  $region36: #{network_forward.1} parent=0 // pred_region
    _
  $region37: #{network_forward.1} parent=0 // pred_fallthru
    _
  %v33 = vld [vmem:[%s0] sm:$0xff]
  %v34 = vld [vmem:[%s1] sm:$0xff]
  %36 = vset.pattern.permute.xlu0 0
  %37 = vperm.xlu0 %36, %v33
  %v38 = vpop.permute.xlu0 %37
  %v41 = vlaneseq
  %v42 = vshrl.u32 %v41, 7
  %v43 = vsub.s32 0, %v42
  %v44 = vrot.slane %v34, %v43
  %v45 = vlaneseq
  %v46 = vshrl.u32 %v45, 7
  %v47 = vsub.s32 2, %v46
  %v48 = vrot.slane %v34, %v47
  %v49 = vlaneseq
  %v50 = vshrl.u32 %v49, 7
  %v51 = vsub.s32 4, %v50
  %v52 = vrot.slane %v34, %v51
  %v53 = vlaneseq
  %v54 = vshrl.u32 %v53, 7
  %v55 = vsub.s32 6, %v54
  %v56 = vrot.slane %v34, %v55
  %v61 = vlaneseq
  %v62 = vshrl.u32 %v61, 7
  %v63 = vsub.s32 0, %v62
  %v64 = vrot.slane %v44, %v63
  %v65 = vlaneseq
  %v66 = vshrl.u32 %v65, 7
  %v67 = vsub.s32 0, %v66
  %v68 = vrot.slane %v48, %v67
  %v69 = vlaneseq
  %v70 = vshrl.u32 %v69, 7
  %v71 = vsub.s32 0, %v70
  %v72 = vrot.slane %v52, %v71
  %v73 = vlaneseq
  %v74 = vshrl.u32 %v73, 7
  %v75 = vsub.s32 0, %v74
  %v76 = vrot.slane %v56, %v75
  %v77 = vmul.f32 %v38, %v64
  %v78 = vmul.f32 %v38, %v68
  %v79 = vmul.f32 %v38, %v72
  %v80 = vmul.f32 %v38, %v76
  %81 = vset.pattern.permute.xlu0 1
  %82 = vperm.xlu0 %81, %v33
  %v83 = vpop.permute.xlu0 %82
  %v85 = vlaneseq
  %v86 = vshrl.u32 %v85, 7
  %v87 = vsub.s32 1, %v86
  %v88 = vrot.slane %v34, %v87
  %v89 = vlaneseq
  %v90 = vshrl.u32 %v89, 7
  %v91 = vsub.s32 3, %v90
  %v92 = vrot.slane %v34, %v91
  %v93 = vlaneseq
  %v94 = vshrl.u32 %v93, 7
  %v95 = vsub.s32 5, %v94
  %v96 = vrot.slane %v34, %v95
  %v97 = vlaneseq
  %v98 = vshrl.u32 %v97, 7
  %v99 = vsub.s32 7, %v98
  %v100 = vrot.slane %v34, %v99
  %v105 = vlaneseq
  %v106 = vshrl.u32 %v105, 7
  %v107 = vsub.s32 1, %v106
  %v108 = vrot.slane %v88, %v107
  %v109 = vlaneseq
  %v110 = vshrl.u32 %v109, 7
  %v111 = vsub.s32 1, %v110
  %v112 = vrot.slane %v92, %v111
  %v113 = vlaneseq
  %v114 = vshrl.u32 %v113, 7
  %v115 = vsub.s32 1, %v114
  %v116 = vrot.slane %v96, %v115
  %v117 = vlaneseq
  %v118 = vshrl.u32 %v117, 7
  %v119 = vsub.s32 1, %v118
  %v120 = vrot.slane %v100, %v119
  %v121 = vmul.f32 %v83, %v108
  %v122 = vmul.f32 %v83, %v112
  %v123 = vmul.f32 %v83, %v116
  %v124 = vmul.f32 %v83, %v120
  %v125 = vadd.f32 %v77, %v121
  %v126 = vadd.f32 %v78, %v122
  %v127 = vadd.f32 %v79, %v123
  %v128 = vadd.f32 %v80, %v124
  %v129 = vld [vmem:[%s2] sm:$0xf]
  %v131 = vlaneseq
  %v132 = vshrl.u32 %v131, 7
  %v133 = vsub.s32 0, %v132
  %v134 = vrot.slane %v129, %v133
  %v135 = vlaneseq
  %v136 = vshrl.u32 %v135, 7
  %v137 = vsub.s32 1, %v136
  %v138 = vrot.slane %v129, %v137
  %v139 = vlaneseq
  %v140 = vshrl.u32 %v139, 7
  %v141 = vsub.s32 2, %v140
  %v142 = vrot.slane %v129, %v141
  %v143 = vlaneseq
  %v144 = vshrl.u32 %v143, 7
  %v145 = vsub.s32 3, %v144
  %v146 = vrot.slane %v129, %v145
  %v151 = vadd.f32 %v125, %v134
  %v152 = vadd.f32 %v126, %v138
  %v153 = vadd.f32 %v127, %v142
  %v154 = vadd.f32 %v128, %v146
  %v155 = vmax.f32 %v151, 0.0
  %v156 = vmax.f32 %v152, 0.0
  %v157 = vmax.f32 %v153, 0.0
  %v158 = vmax.f32 %v154, 0.0
  %v159 = vpack.c.bf16 %v155, %v155
  %v160 = vpack.c.bf16 %v156, %v156
  %v161 = vpack.c.bf16 %v157, %v157
  %v162 = vpack.c.bf16 %v158, %v158
  %v163 = vld [vmem:[%s3] sm:$0xff]
  %v164 = vld [vmem:[%s3 + $0x8] sm:$0xff]
  %v165 = vld [vmem:[%s3 + $0x10] sm:$0xff]
  %v166 = vld [vmem:[%s3 + $0x18] sm:$0xff]
  %v167 = vld [vmem:[%s3 + $0x20] sm:$0xff]
  %v168 = vld [vmem:[%s3 + $0x28] sm:$0xff]
  %v169 = vld [vmem:[%s3 + $0x30] sm:$0xff]
  %v170 = vld [vmem:[%s3 + $0x38] sm:$0xff]
  %v171 = vld [vmem:[%s3 + $0x40] sm:$0xff]
  %v172 = vld [vmem:[%s3 + $0x48] sm:$0xff]
  %v173 = vld [vmem:[%s3 + $0x50] sm:$0xff]
  %v174 = vld [vmem:[%s3 + $0x58] sm:$0xff]
  %v175 = vld [vmem:[%s3 + $0x60] sm:$0xff]
  %v176 = vld [vmem:[%s3 + $0x68] sm:$0xff]
  %v177 = vld [vmem:[%s3 + $0x70] sm:$0xff]
  %v178 = vld [vmem:[%s3 + $0x78] sm:$0xff]
  %v179 = vld [vmem:[%s3 + $0x80] sm:$0xff]
  %v180 = vld [vmem:[%s3 + $0x88] sm:$0xff]
  %v181 = vld [vmem:[%s3 + $0x90] sm:$0xff]
  %v182 = vld [vmem:[%s3 + $0x98] sm:$0xff]
  %v183 = vld [vmem:[%s3 + $0xa0] sm:$0xff]
  %v184 = vld [vmem:[%s3 + $0xa8] sm:$0xff]
  %v185 = vld [vmem:[%s3 + $0xb0] sm:$0xff]
  %v186 = vld [vmem:[%s3 + $0xb8] sm:$0xff]
  %v187 = vld [vmem:[%s3 + $0xc0] sm:$0xff]
  %v188 = vld [vmem:[%s3 + $0xc8] sm:$0xff]
  %v189 = vld [vmem:[%s3 + $0xd0] sm:$0xff]
  %v190 = vld [vmem:[%s3 + $0xd8] sm:$0xff]
  %v191 = vld [vmem:[%s3 + $0xe0] sm:$0xff]
  %v192 = vld [vmem:[%s3 + $0xe8] sm:$0xff]
  %v193 = vld [vmem:[%s3 + $0xf0] sm:$0xff]
  %v194 = vld [vmem:[%s3 + $0xf8] sm:$0xff]
  %v195 = vld [vmem:[%s4] sm:$0x3]
  %v197 = vlaneseq
  %v198 = vshrl.u32 %v197, 7
  %v199 = vsub.s32 0, %v198
  %v200 = vrot.slane %v195, %v199
  %v201 = vlaneseq
  %v202 = vshrl.u32 %v201, 7
  %v203 = vsub.s32 1, %v202
  %v204 = vrot.slane %v195, %v203
  %v239 = vunpack.c.l.b16 %v163
  %v240 = vunpack.c.h.b16 %v163
  %v241 = vunpack.c.l.b16 %v164
  %v242 = vunpack.c.h.b16 %v164
  %v243 = vunpack.c.l.b16 %v165
  %v244 = vunpack.c.h.b16 %v165
  %v245 = vunpack.c.l.b16 %v166
  %v246 = vunpack.c.h.b16 %v166
  %v247 = vunpack.c.l.b16 %v167
  %v248 = vunpack.c.h.b16 %v167
  %v249 = vunpack.c.l.b16 %v168
  %v250 = vunpack.c.h.b16 %v168
  %v251 = vunpack.c.l.b16 %v169
  %v252 = vunpack.c.h.b16 %v169
  %v253 = vunpack.c.l.b16 %v170
  %v254 = vunpack.c.h.b16 %v170
  %v255 = vunpack.c.l.b16 %v171
  %v256 = vunpack.c.h.b16 %v171
  %v257 = vunpack.c.l.b16 %v172
  %v258 = vunpack.c.h.b16 %v172
  %v259 = vunpack.c.l.b16 %v173
  %v260 = vunpack.c.h.b16 %v173
  %v261 = vunpack.c.l.b16 %v174
  %v262 = vunpack.c.h.b16 %v174
  %v263 = vunpack.c.l.b16 %v175
  %v264 = vunpack.c.h.b16 %v175
  %v265 = vunpack.c.l.b16 %v176
  %v266 = vunpack.c.h.b16 %v176
  %v267 = vunpack.c.l.b16 %v177
  %v268 = vunpack.c.h.b16 %v177
  %v269 = vunpack.c.l.b16 %v178
  %v270 = vunpack.c.h.b16 %v178
  %v271 = vunpack.c.l.b16 %v179
  %v272 = vunpack.c.h.b16 %v179
  %v273 = vunpack.c.l.b16 %v180
  %v274 = vunpack.c.h.b16 %v180
  %v275 = vunpack.c.l.b16 %v181
  %v276 = vunpack.c.h.b16 %v181
  %v277 = vunpack.c.l.b16 %v182
  %v278 = vunpack.c.h.b16 %v182
  %v279 = vunpack.c.l.b16 %v183
  %v280 = vunpack.c.h.b16 %v183
  %v281 = vunpack.c.l.b16 %v184
  %v282 = vunpack.c.h.b16 %v184
  %v283 = vunpack.c.l.b16 %v185
  %v284 = vunpack.c.h.b16 %v185
  %v285 = vunpack.c.l.b16 %v186
  %v286 = vunpack.c.h.b16 %v186
  %v287 = vunpack.c.l.b16 %v187
  %v288 = vunpack.c.h.b16 %v187
  %v289 = vunpack.c.l.b16 %v188
  %v290 = vunpack.c.h.b16 %v188
  %v291 = vunpack.c.l.b16 %v189
  %v292 = vunpack.c.h.b16 %v189
  %v293 = vunpack.c.l.b16 %v190
  %v294 = vunpack.c.h.b16 %v190
  %v295 = vunpack.c.l.b16 %v191
  %v296 = vunpack.c.h.b16 %v191
  %v297 = vunpack.c.l.b16 %v192
  %v298 = vunpack.c.h.b16 %v192
  %v299 = vunpack.c.l.b16 %v193
  %v300 = vunpack.c.h.b16 %v193
  %v301 = vunpack.c.l.b16 %v194
  %v302 = vunpack.c.h.b16 %v194
  %v303 = vpack.c.b16 %v241, %v239
  %v304 = vpack.c.b16 %v242, %v240
  %v305 = vpack.c.b16 %v245, %v243
  %v306 = vpack.c.b16 %v246, %v244
  %v307 = vpack.c.b16 %v249, %v247
  %v308 = vpack.c.b16 %v250, %v248
  %v309 = vpack.c.b16 %v253, %v251
  %v310 = vpack.c.b16 %v254, %v252
  %v311 = vpack.c.b16 %v257, %v255
  %v312 = vpack.c.b16 %v258, %v256
  %v313 = vpack.c.b16 %v261, %v259
  %v314 = vpack.c.b16 %v262, %v260
  %v315 = vpack.c.b16 %v265, %v263
  %v316 = vpack.c.b16 %v266, %v264
  %v317 = vpack.c.b16 %v269, %v267
  %v318 = vpack.c.b16 %v270, %v268
  %v319 = vpack.c.b16 %v273, %v271
  %v320 = vpack.c.b16 %v274, %v272
  %v321 = vpack.c.b16 %v277, %v275
  %v322 = vpack.c.b16 %v278, %v276
  %v323 = vpack.c.b16 %v281, %v279
  %v324 = vpack.c.b16 %v282, %v280
  %v325 = vpack.c.b16 %v285, %v283
  %v326 = vpack.c.b16 %v286, %v284
  %v327 = vpack.c.b16 %v289, %v287
  %v328 = vpack.c.b16 %v290, %v288
  %v329 = vpack.c.b16 %v293, %v291
  %v330 = vpack.c.b16 %v294, %v292
  %v331 = vpack.c.b16 %v297, %v295
  %v332 = vpack.c.b16 %v298, %v296
  %v333 = vpack.c.b16 %v301, %v299
  %v334 = vpack.c.b16 %v302, %v300
  %367 = vmatprep.subr.bf16.mxu0 %v304
  %368 = vmatpush1.bf16.msra.mxu0 %v303
  %369 = vmatprep.subr.bf16.mxu0 %v306
  %370 = vmatpush1.bf16.msra.mxu0 %v305
  %371 = vmatprep.subr.bf16.mxu0 %v308
  %372 = vmatpush1.bf16.msra.mxu0 %v307
  %373 = vmatprep.subr.bf16.mxu0 %v310
  %374 = vmatpush1.bf16.msra.mxu0 %v309
  %375 = vmatprep.subr.bf16.mxu0 %v312
  %376 = vmatpush1.bf16.msra.mxu0 %v311
  %377 = vmatprep.subr.bf16.mxu0 %v314
  %378 = vmatpush1.bf16.msra.mxu0 %v313
  %379 = vmatprep.subr.bf16.mxu0 %v316
  %380 = vmatpush1.bf16.msra.mxu0 %v315
  %381 = vmatprep.subr.bf16.mxu0 %v318
  %382 = vmatpush1.bf16.msra.mxu0 %v317
  %383 = vmatprep.subr.bf16.mxu0 %v320
  %384 = vmatpush1.bf16.msra.mxu0 %v319
  %385 = vmatprep.subr.bf16.mxu0 %v322
  %386 = vmatpush1.bf16.msra.mxu0 %v321
  %387 = vmatprep.subr.bf16.mxu0 %v324
  %388 = vmatpush1.bf16.msra.mxu0 %v323
  %389 = vmatprep.subr.bf16.mxu0 %v326
  %390 = vmatpush1.bf16.msra.mxu0 %v325
  %391 = vmatprep.subr.bf16.mxu0 %v328
  %392 = vmatpush1.bf16.msra.mxu0 %v327
  %393 = vmatprep.subr.bf16.mxu0 %v330
  %394 = vmatpush1.bf16.msra.mxu0 %v329
  %395 = vmatprep.subr.bf16.mxu0 %v332
  %396 = vmatpush1.bf16.msra.mxu0 %v331
  %397 = vmatprep.subr.bf16.mxu0 %v334
  %398 = vmatpush1.bf16.msra.mxu0 %v333
  %399 = vmatprep.mubr.bf16.mxu0 %v160
  %400 = vmatmul.mubr.bf16.gmra.mrb[0].mxu0 %v159
  %v401 = vpop.f32.mrb[0].mxu0
  %v402 = vadd.f32 %v200, %v401
  %v403 = vpop.f32.mrb[0].mxu0
  %v404 = vadd.f32 %v204, %v403
  %v405 = vpop.f32.mrb[0].mxu0
  %v406 = vpop.f32.mrb[0].mxu0
  %407 = vdwg.mxu0
  %v408 = vld [vmem:[%s5] sm:$0xff]
  %v409 = vld [vmem:[%s5 + $0x8] sm:$0xff]
  %v410 = vld [vmem:[%s5 + $0x10] sm:$0xff]
  %v411 = vld [vmem:[%s5 + $0x18] sm:$0xff]
  %v412 = vld [vmem:[%s5 + $0x20] sm:$0xff]
  %v413 = vld [vmem:[%s5 + $0x28] sm:$0xff]
  %v414 = vld [vmem:[%s5 + $0x30] sm:$0xff]
  %v415 = vld [vmem:[%s5 + $0x38] sm:$0xff]
  %v416 = vld [vmem:[%s5 + $0x40] sm:$0xff]
  %v417 = vld [vmem:[%s5 + $0x48] sm:$0xff]
  %v418 = vld [vmem:[%s5 + $0x50] sm:$0xff]
  %v419 = vld [vmem:[%s5 + $0x58] sm:$0xff]
  %v420 = vld [vmem:[%s5 + $0x60] sm:$0xff]
  %v421 = vld [vmem:[%s5 + $0x68] sm:$0xff]
  %v422 = vld [vmem:[%s5 + $0x70] sm:$0xff]
  %v423 = vld [vmem:[%s5 + $0x78] sm:$0xff]
  %v424 = vld [vmem:[%s5 + $0x80] sm:$0xff]
  %v425 = vld [vmem:[%s5 + $0x88] sm:$0xff]
  %v426 = vld [vmem:[%s5 + $0x90] sm:$0xff]
  %v427 = vld [vmem:[%s5 + $0x98] sm:$0xff]
  %v428 = vld [vmem:[%s5 + $0xa0] sm:$0xff]
  %v429 = vld [vmem:[%s5 + $0xa8] sm:$0xff]
  %v430 = vld [vmem:[%s5 + $0xb0] sm:$0xff]
  %v431 = vld [vmem:[%s5 + $0xb8] sm:$0xff]
  %v432 = vld [vmem:[%s5 + $0xc0] sm:$0xff]
  %v433 = vld [vmem:[%s5 + $0xc8] sm:$0xff]
  %v434 = vld [vmem:[%s5 + $0xd0] sm:$0xff]
  %v435 = vld [vmem:[%s5 + $0xd8] sm:$0xff]
  %v436 = vld [vmem:[%s5 + $0xe0] sm:$0xff]
  %v437 = vld [vmem:[%s5 + $0xe8] sm:$0xff]
  %v438 = vld [vmem:[%s5 + $0xf0] sm:$0xff]
  %v439 = vld [vmem:[%s5 + $0xf8] sm:$0xff]
  %v440 = vld [vmem:[%s6] sm:$0x3]
  %v442 = vlaneseq
  %v443 = vshrl.u32 %v442, 7
  %v444 = vsub.s32 0, %v443
  %v445 = vrot.slane %v440, %v444
  %v446 = vlaneseq
  %v447 = vshrl.u32 %v446, 7
  %v448 = vsub.s32 1, %v447
  %v449 = vrot.slane %v440, %v448
  %v484 = vunpack.c.l.b16 %v408
  %v485 = vunpack.c.h.b16 %v408
  %v486 = vunpack.c.l.b16 %v409
  %v487 = vunpack.c.h.b16 %v409
  %v488 = vunpack.c.l.b16 %v410
  %v489 = vunpack.c.h.b16 %v410
  %v490 = vunpack.c.l.b16 %v411
  %v491 = vunpack.c.h.b16 %v411
  %v492 = vunpack.c.l.b16 %v412
  %v493 = vunpack.c.h.b16 %v412
  %v494 = vunpack.c.l.b16 %v413
  %v495 = vunpack.c.h.b16 %v413
  %v496 = vunpack.c.l.b16 %v414
  %v497 = vunpack.c.h.b16 %v414
  %v498 = vunpack.c.l.b16 %v415
  %v499 = vunpack.c.h.b16 %v415
  %v500 = vunpack.c.l.b16 %v416
  %v501 = vunpack.c.h.b16 %v416
  %v502 = vunpack.c.l.b16 %v417
  %v503 = vunpack.c.h.b16 %v417
  %v504 = vunpack.c.l.b16 %v418
  %v505 = vunpack.c.h.b16 %v418
  %v506 = vunpack.c.l.b16 %v419
  %v507 = vunpack.c.h.b16 %v419
  %v508 = vunpack.c.l.b16 %v420
  %v509 = vunpack.c.h.b16 %v420
  %v510 = vunpack.c.l.b16 %v421
  %v511 = vunpack.c.h.b16 %v421
  %v512 = vunpack.c.l.b16 %v422
  %v513 = vunpack.c.h.b16 %v422
  %v514 = vunpack.c.l.b16 %v423
  %v515 = vunpack.c.h.b16 %v423
  %v516 = vunpack.c.l.b16 %v424
  %v517 = vunpack.c.h.b16 %v424
  %v518 = vunpack.c.l.b16 %v425
  %v519 = vunpack.c.h.b16 %v425
  %v520 = vunpack.c.l.b16 %v426
  %v521 = vunpack.c.h.b16 %v426
  %v522 = vunpack.c.l.b16 %v427
  %v523 = vunpack.c.h.b16 %v427
  %v524 = vunpack.c.l.b16 %v428
  %v525 = vunpack.c.h.b16 %v428
  %v526 = vunpack.c.l.b16 %v429
  %v527 = vunpack.c.h.b16 %v429
  %v528 = vunpack.c.l.b16 %v430
  %v529 = vunpack.c.h.b16 %v430
  %v530 = vunpack.c.l.b16 %v431
  %v531 = vunpack.c.h.b16 %v431
  %v532 = vunpack.c.l.b16 %v432
  %v533 = vunpack.c.h.b16 %v432
  %v534 = vunpack.c.l.b16 %v433
  %v535 = vunpack.c.h.b16 %v433
  %v536 = vunpack.c.l.b16 %v434
  %v537 = vunpack.c.h.b16 %v434
  %v538 = vunpack.c.l.b16 %v435
  %v539 = vunpack.c.h.b16 %v435
  %v540 = vunpack.c.l.b16 %v436
  %v541 = vunpack.c.h.b16 %v436
  %v542 = vunpack.c.l.b16 %v437
  %v543 = vunpack.c.h.b16 %v437
  %v544 = vunpack.c.l.b16 %v438
  %v545 = vunpack.c.h.b16 %v438
  %v546 = vunpack.c.l.b16 %v439
  %v547 = vunpack.c.h.b16 %v439
  %v548 = vpack.c.b16 %v486, %v484
  %v549 = vpack.c.b16 %v487, %v485
  %v550 = vpack.c.b16 %v490, %v488
  %v551 = vpack.c.b16 %v491, %v489
  %v552 = vpack.c.b16 %v494, %v492
  %v553 = vpack.c.b16 %v495, %v493
  %v554 = vpack.c.b16 %v498, %v496
  %v555 = vpack.c.b16 %v499, %v497
  %v556 = vpack.c.b16 %v502, %v500
  %v557 = vpack.c.b16 %v503, %v501
  %v558 = vpack.c.b16 %v506, %v504
  %v559 = vpack.c.b16 %v507, %v505
  %v560 = vpack.c.b16 %v510, %v508
  %v561 = vpack.c.b16 %v511, %v509
  %v562 = vpack.c.b16 %v514, %v512
  %v563 = vpack.c.b16 %v515, %v513
  %v564 = vpack.c.b16 %v518, %v516
  %v565 = vpack.c.b16 %v519, %v517
  %v566 = vpack.c.b16 %v522, %v520
  %v567 = vpack.c.b16 %v523, %v521
  %v568 = vpack.c.b16 %v526, %v524
  %v569 = vpack.c.b16 %v527, %v525
  %v570 = vpack.c.b16 %v530, %v528
  %v571 = vpack.c.b16 %v531, %v529
  %v572 = vpack.c.b16 %v534, %v532
  %v573 = vpack.c.b16 %v535, %v533
  %v574 = vpack.c.b16 %v538, %v536
  %v575 = vpack.c.b16 %v539, %v537
  %v576 = vpack.c.b16 %v542, %v540
  %v577 = vpack.c.b16 %v543, %v541
  %v578 = vpack.c.b16 %v546, %v544
  %v579 = vpack.c.b16 %v547, %v545
  %612 = vmatprep.subr.bf16.mxu0 %v549
  %613 = vmatpush1.bf16.msra.mxu0 %v548
  %614 = vmatprep.subr.bf16.mxu0 %v551
  %615 = vmatpush1.bf16.msra.mxu0 %v550
  %616 = vmatprep.subr.bf16.mxu0 %v553
  %617 = vmatpush1.bf16.msra.mxu0 %v552
  %618 = vmatprep.subr.bf16.mxu0 %v555
  %619 = vmatpush1.bf16.msra.mxu0 %v554
  %620 = vmatprep.subr.bf16.mxu0 %v557
  %621 = vmatpush1.bf16.msra.mxu0 %v556
  %622 = vmatprep.subr.bf16.mxu0 %v559
  %623 = vmatpush1.bf16.msra.mxu0 %v558
  %624 = vmatprep.subr.bf16.mxu0 %v561
  %625 = vmatpush1.bf16.msra.mxu0 %v560
  %626 = vmatprep.subr.bf16.mxu0 %v563
  %627 = vmatpush1.bf16.msra.mxu0 %v562
  %628 = vmatprep.subr.bf16.mxu0 %v565
  %629 = vmatpush1.bf16.msra.mxu0 %v564
  %630 = vmatprep.subr.bf16.mxu0 %v567
  %631 = vmatpush1.bf16.msra.mxu0 %v566
  %632 = vmatprep.subr.bf16.mxu0 %v569
  %633 = vmatpush1.bf16.msra.mxu0 %v568
  %634 = vmatprep.subr.bf16.mxu0 %v571
  %635 = vmatpush1.bf16.msra.mxu0 %v570
  %636 = vmatprep.subr.bf16.mxu0 %v573
  %637 = vmatpush1.bf16.msra.mxu0 %v572
  %638 = vmatprep.subr.bf16.mxu0 %v575
  %639 = vmatpush1.bf16.msra.mxu0 %v574
  %640 = vmatprep.subr.bf16.mxu0 %v577
  %641 = vmatpush1.bf16.msra.mxu0 %v576
  %642 = vmatprep.subr.bf16.mxu0 %v579
  %643 = vmatpush1.bf16.msra.mxu0 %v578
  %644 = vmatprep.mubr.bf16.mxu0 %v162
  %645 = vmatmul.mubr.bf16.gmra.mrb[0].mxu0 %v161
  %v646 = vpop.f32.mrb[0].mxu0
  %v647 = vadd.f32 %v445, %v646
  %v648 = vpop.f32.mrb[0].mxu0
  %v649 = vadd.f32 %v449, %v648
  %v650 = vpop.f32.mrb[0].mxu0
  %v651 = vpop.f32.mrb[0].mxu0
  %652 = vdwg.mxu0
  %v653 = vmax.f32 %v402, 0.0
  %v654 = vmax.f32 %v404, 0.0
  %v655 = vmax.f32 %v647, 0.0
  %v656 = vmax.f32 %v649, 0.0
  %v657 = vpack.c.bf16 %v653, %v653
  %v658 = vpack.c.bf16 %v654, %v654
  %v659 = vpack.c.bf16 %v655, %v655
  %v660 = vpack.c.bf16 %v656, %v656
  %v661 = vld [vmem:[%s7] sm:$0xf]
  %v662 = vld [vmem:[%s7 + $0x4] sm:$0xf]
  %v663 = vld [vmem:[%s7 + $0x8] sm:$0xf]
  %v664 = vld [vmem:[%s7 + $0xc] sm:$0xf]
  %v665 = vld [vmem:[%s7 + $0x10] sm:$0xf]
  %v666 = vld [vmem:[%s7 + $0x14] sm:$0xf]
  %v667 = vld [vmem:[%s7 + $0x18] sm:$0xf]
  %v668 = vld [vmem:[%s7 + $0x1c] sm:$0xf]
  %v669 = vld [vmem:[%s7 + $0x20] sm:$0xf]
  %v670 = vld [vmem:[%s7 + $0x24] sm:$0xf]
  %v671 = vld [vmem:[%s7 + $0x28] sm:$0xf]
  %v672 = vld [vmem:[%s7 + $0x2c] sm:$0xf]
  %v673 = vld [vmem:[%s7 + $0x30] sm:$0xf]
  %v674 = vld [vmem:[%s7 + $0x34] sm:$0xf]
  %v675 = vld [vmem:[%s7 + $0x38] sm:$0xf]
  %v676 = vld [vmem:[%s7 + $0x3c] sm:$0xf]
  %v677 = vld [vmem:[%s7 + $0x40] sm:$0xf]
  %v678 = vld [vmem:[%s7 + $0x44] sm:$0xf]
  %v679 = vld [vmem:[%s7 + $0x48] sm:$0xf]
  %v680 = vld [vmem:[%s7 + $0x4c] sm:$0xf]
  %v681 = vld [vmem:[%s7 + $0x50] sm:$0xf]
  %v682 = vld [vmem:[%s7 + $0x54] sm:$0xf]
  %v683 = vld [vmem:[%s7 + $0x58] sm:$0xf]
  %v684 = vld [vmem:[%s7 + $0x5c] sm:$0xf]
  %v685 = vld [vmem:[%s7 + $0x60] sm:$0xf]
  %v686 = vld [vmem:[%s7 + $0x64] sm:$0xf]
  %v687 = vld [vmem:[%s7 + $0x68] sm:$0xf]
  %v688 = vld [vmem:[%s7 + $0x6c] sm:$0xf]
  %v689 = vld [vmem:[%s7 + $0x70] sm:$0xf]
  %v690 = vld [vmem:[%s7 + $0x74] sm:$0xf]
  %v691 = vld [vmem:[%s7 + $0x78] sm:$0xf]
  %v692 = vld [vmem:[%s7 + $0x7c] sm:$0xf]
  %v693 = vld [vmem:[%s7 + $0x80] sm:$0xf]
  %v694 = vld [vmem:[%s7 + $0x84] sm:$0xf]
  %v695 = vld [vmem:[%s7 + $0x88] sm:$0xf]
  %v696 = vld [vmem:[%s7 + $0x8c] sm:$0xf]
  %v697 = vld [vmem:[%s7 + $0x90] sm:$0xf]
  %v698 = vld [vmem:[%s7 + $0x94] sm:$0xf]
  %v699 = vld [vmem:[%s7 + $0x98] sm:$0xf]
  %v700 = vld [vmem:[%s7 + $0x9c] sm:$0xf]
  %v701 = vld [vmem:[%s7 + $0xa0] sm:$0xf]
  %v702 = vld [vmem:[%s7 + $0xa4] sm:$0xf]
  %v703 = vld [vmem:[%s7 + $0xa8] sm:$0xf]
  %v704 = vld [vmem:[%s7 + $0xac] sm:$0xf]
  %v705 = vld [vmem:[%s7 + $0xb0] sm:$0xf]
  %v706 = vld [vmem:[%s7 + $0xb4] sm:$0xf]
  %v707 = vld [vmem:[%s7 + $0xb8] sm:$0xf]
  %v708 = vld [vmem:[%s7 + $0xbc] sm:$0xf]
  %v709 = vld [vmem:[%s7 + $0xc0] sm:$0xf]
  %v710 = vld [vmem:[%s7 + $0xc4] sm:$0xf]
  %v711 = vld [vmem:[%s7 + $0xc8] sm:$0xf]
  %v712 = vld [vmem:[%s7 + $0xcc] sm:$0xf]
  %v713 = vld [vmem:[%s7 + $0xd0] sm:$0xf]
  %v714 = vld [vmem:[%s7 + $0xd4] sm:$0xf]
  %v715 = vld [vmem:[%s7 + $0xd8] sm:$0xf]
  %v716 = vld [vmem:[%s7 + $0xdc] sm:$0xf]
  %v717 = vld [vmem:[%s7 + $0xe0] sm:$0xf]
  %v718 = vld [vmem:[%s7 + $0xe4] sm:$0xf]
  %v719 = vld [vmem:[%s7 + $0xe8] sm:$0xf]
  %v720 = vld [vmem:[%s7 + $0xec] sm:$0xf]
  %v721 = vld [vmem:[%s7 + $0xf0] sm:$0xf]
  %v722 = vld [vmem:[%s7 + $0xf4] sm:$0xf]
  %v723 = vld [vmem:[%s7 + $0xf8] sm:$0xf]
  %v724 = vld [vmem:[%s7 + $0xfc] sm:$0xf]
  %v725 = vld [vmem:[%s8] sm:$0x1]
  %v727 = vlaneseq
  %v728 = vshrl.u32 %v727, 7
  %v729 = vsub.s32 0, %v728
  %v730 = vrot.slane %v725, %v729
  %v796 = vunpack.c.l.b16 %v661
  %v797 = vunpack.c.l.b16 %v662
  %v798 = vunpack.c.l.b16 %v663
  %v799 = vunpack.c.l.b16 %v664
  %v800 = vunpack.c.l.b16 %v665
  %v801 = vunpack.c.l.b16 %v666
  %v802 = vunpack.c.l.b16 %v667
  %v803 = vunpack.c.l.b16 %v668
  %v804 = vunpack.c.l.b16 %v669
  %v805 = vunpack.c.l.b16 %v670
  %v806 = vunpack.c.l.b16 %v671
  %v807 = vunpack.c.l.b16 %v672
  %v808 = vunpack.c.l.b16 %v673
  %v809 = vunpack.c.l.b16 %v674
  %v810 = vunpack.c.l.b16 %v675
  %v811 = vunpack.c.l.b16 %v676
  %v812 = vunpack.c.l.b16 %v677
  %v813 = vunpack.c.l.b16 %v678
  %v814 = vunpack.c.l.b16 %v679
  %v815 = vunpack.c.l.b16 %v680
  %v816 = vunpack.c.l.b16 %v681
  %v817 = vunpack.c.l.b16 %v682
  %v818 = vunpack.c.l.b16 %v683
  %v819 = vunpack.c.l.b16 %v684
  %v820 = vunpack.c.l.b16 %v685
  %v821 = vunpack.c.l.b16 %v686
  %v822 = vunpack.c.l.b16 %v687
  %v823 = vunpack.c.l.b16 %v688
  %v824 = vunpack.c.l.b16 %v689
  %v825 = vunpack.c.l.b16 %v690
  %v826 = vunpack.c.l.b16 %v691
  %v827 = vunpack.c.l.b16 %v692
  %v828 = vunpack.c.l.b16 %v693
  %v829 = vunpack.c.l.b16 %v694
  %v830 = vunpack.c.l.b16 %v695
  %v831 = vunpack.c.l.b16 %v696
  %v832 = vunpack.c.l.b16 %v697
  %v833 = vunpack.c.l.b16 %v698
  %v834 = vunpack.c.l.b16 %v699
  %v835 = vunpack.c.l.b16 %v700
  %v836 = vunpack.c.l.b16 %v701
  %v837 = vunpack.c.l.b16 %v702
  %v838 = vunpack.c.l.b16 %v703
  %v839 = vunpack.c.l.b16 %v704
  %v840 = vunpack.c.l.b16 %v705
  %v841 = vunpack.c.l.b16 %v706
  %v842 = vunpack.c.l.b16 %v707
  %v843 = vunpack.c.l.b16 %v708
  %v844 = vunpack.c.l.b16 %v709
  %v845 = vunpack.c.l.b16 %v710
  %v846 = vunpack.c.l.b16 %v711
  %v847 = vunpack.c.l.b16 %v712
  %v848 = vunpack.c.l.b16 %v713
  %v849 = vunpack.c.l.b16 %v714
  %v850 = vunpack.c.l.b16 %v715
  %v851 = vunpack.c.l.b16 %v716
  %v852 = vunpack.c.l.b16 %v717
  %v853 = vunpack.c.l.b16 %v718
  %v854 = vunpack.c.l.b16 %v719
  %v855 = vunpack.c.l.b16 %v720
  %v856 = vunpack.c.l.b16 %v721
  %v857 = vunpack.c.l.b16 %v722
  %v858 = vunpack.c.l.b16 %v723
  %v859 = vunpack.c.l.b16 %v724
  %v860 = vpack.c.b16 %v797, %v796
  %v861 = vpack.c.b16 %v799, %v798
  %v862 = vpack.c.b16 %v801, %v800
  %v863 = vpack.c.b16 %v803, %v802
  %v864 = vpack.c.b16 %v805, %v804
  %v865 = vpack.c.b16 %v807, %v806
  %v866 = vpack.c.b16 %v809, %v808
  %v867 = vpack.c.b16 %v811, %v810
  %v868 = vpack.c.b16 %v813, %v812
  %v869 = vpack.c.b16 %v815, %v814
  %v870 = vpack.c.b16 %v817, %v816
  %v871 = vpack.c.b16 %v819, %v818
  %v872 = vpack.c.b16 %v821, %v820
  %v873 = vpack.c.b16 %v823, %v822
  %v874 = vpack.c.b16 %v825, %v824
  %v875 = vpack.c.b16 %v827, %v826
  %v876 = vpack.c.b16 %v829, %v828
  %v877 = vpack.c.b16 %v831, %v830
  %v878 = vpack.c.b16 %v833, %v832
  %v879 = vpack.c.b16 %v835, %v834
  %v880 = vpack.c.b16 %v837, %v836
  %v881 = vpack.c.b16 %v839, %v838
  %v882 = vpack.c.b16 %v841, %v840
  %v883 = vpack.c.b16 %v843, %v842
  %v884 = vpack.c.b16 %v845, %v844
  %v885 = vpack.c.b16 %v847, %v846
  %v886 = vpack.c.b16 %v849, %v848
  %v887 = vpack.c.b16 %v851, %v850
  %v888 = vpack.c.b16 %v853, %v852
  %v889 = vpack.c.b16 %v855, %v854
  %v890 = vpack.c.b16 %v857, %v856
  %v891 = vpack.c.b16 %v859, %v858
  %924 = vmatprep.subr.bf16.mxu0 0
  %925 = vmatpush1.bf16.msra.mxu0 %v860
  %926 = vmatprep.subr.bf16.mxu0 0
  %927 = vmatpush1.bf16.msra.mxu0 %v861
  %928 = vmatprep.subr.bf16.mxu0 0
  %929 = vmatpush1.bf16.msra.mxu0 %v862
  %930 = vmatprep.subr.bf16.mxu0 0
  %931 = vmatpush1.bf16.msra.mxu0 %v863
  %932 = vmatprep.subr.bf16.mxu0 0
  %933 = vmatpush1.bf16.msra.mxu0 %v864
  %934 = vmatprep.subr.bf16.mxu0 0
  %935 = vmatpush1.bf16.msra.mxu0 %v865
  %936 = vmatprep.subr.bf16.mxu0 0
  %937 = vmatpush1.bf16.msra.mxu0 %v866
  %938 = vmatprep.subr.bf16.mxu0 0
  %939 = vmatpush1.bf16.msra.mxu0 %v867
  %940 = vmatprep.subr.bf16.mxu0 0
  %941 = vmatpush1.bf16.msra.mxu0 %v868
  %942 = vmatprep.subr.bf16.mxu0 0
  %943 = vmatpush1.bf16.msra.mxu0 %v869
  %944 = vmatprep.subr.bf16.mxu0 0
  %945 = vmatpush1.bf16.msra.mxu0 %v870
  %946 = vmatprep.subr.bf16.mxu0 0
  %947 = vmatpush1.bf16.msra.mxu0 %v871
  %948 = vmatprep.subr.bf16.mxu0 0
  %949 = vmatpush1.bf16.msra.mxu0 %v872
  %950 = vmatprep.subr.bf16.mxu0 0
  %951 = vmatpush1.bf16.msra.mxu0 %v873
  %952 = vmatprep.subr.bf16.mxu0 0
  %953 = vmatpush1.bf16.msra.mxu0 %v874
  %954 = vmatprep.subr.bf16.mxu0 0
  %955 = vmatpush1.bf16.msra.mxu0 %v875
  %956 = vmatprep.mubr.bf16.mxu0 %v658
  %957 = vmatmul.mubr.bf16.gmra.mrb[0].mxu0 %v657
  %v958 = vpop.f32.mrb[0].mxu0
  %v959 = vadd.f32 %v730, %v958
  %v960 = vpop.f32.mrb[0].mxu0
  %v961 = vpop.f32.mrb[0].mxu0
  %v962 = vpop.f32.mrb[0].mxu0
  %963 = vdwg.mxu0
  %964 = vmatprep.subr.bf16.mxu0 0
  %965 = vmatpush1.bf16.msra.mxu0 %v876
  %966 = vmatprep.subr.bf16.mxu0 0
  %967 = vmatpush1.bf16.msra.mxu0 %v877
  %968 = vmatprep.subr.bf16.mxu0 0
  %969 = vmatpush1.bf16.msra.mxu0 %v878
  %970 = vmatprep.subr.bf16.mxu0 0
  %971 = vmatpush1.bf16.msra.mxu0 %v879
  %972 = vmatprep.subr.bf16.mxu0 0
  %973 = vmatpush1.bf16.msra.mxu0 %v880
  %974 = vmatprep.subr.bf16.mxu0 0
  %975 = vmatpush1.bf16.msra.mxu0 %v881
  %976 = vmatprep.subr.bf16.mxu0 0
  %977 = vmatpush1.bf16.msra.mxu0 %v882
  %978 = vmatprep.subr.bf16.mxu0 0
  %979 = vmatpush1.bf16.msra.mxu0 %v883
  %980 = vmatprep.subr.bf16.mxu0 0
  %981 = vmatpush1.bf16.msra.mxu0 %v884
  %982 = vmatprep.subr.bf16.mxu0 0
  %983 = vmatpush1.bf16.msra.mxu0 %v885
  %984 = vmatprep.subr.bf16.mxu0 0
  %985 = vmatpush1.bf16.msra.mxu0 %v886
  %986 = vmatprep.subr.bf16.mxu0 0
  %987 = vmatpush1.bf16.msra.mxu0 %v887
  %988 = vmatprep.subr.bf16.mxu0 0
  %989 = vmatpush1.bf16.msra.mxu0 %v888
  %990 = vmatprep.subr.bf16.mxu0 0
  %991 = vmatpush1.bf16.msra.mxu0 %v889
  %992 = vmatprep.subr.bf16.mxu0 0
  %993 = vmatpush1.bf16.msra.mxu0 %v890
  %994 = vmatprep.subr.bf16.mxu0 0
  %995 = vmatpush1.bf16.msra.mxu0 %v891
  %996 = vmatprep.mubr.bf16.mxu0 %v660
  %997 = vmatmul.mubr.bf16.gmra.mrb[0].mxu0 %v659
  %v998 = vpop.f32.mrb[0].mxu0
  %v999 = vadd.f32 %v959, %v998
  %v1000 = vpop.f32.mrb[0].mxu0
  %v1001 = vpop.f32.mrb[0].mxu0
  %v1002 = vpop.f32.mrb[0].mxu0
  %1003 = vdwg.mxu0
  %v1004 = vlaneseq
  %v1005 = vand.u32 %v1004, 127
  %vm1006 = vcmp.lt.s32.totalorder %v1005, 4
  %v1007 = vsel %vm1006, %v999, -inf
  %vm1008 = vcmask 64512
  %v1009 = vsel %vm1008, %v1007, -inf
  %1010 = vmax.xlane.f32.xlu0 %v1009
  %v1011 = vpop.xlane.xlu0 %1010
  %v1012 = vsub.f32 %v1007, %v1011
  %v1013 = vmul.f32 %v1012, 1.442695
  %v1014 = vpow.pop %v1013
  %v1015 = vsel %vm1008, %v1014, 0.0
  %1016 = vadd.xlane.f32.xlu0 %v1015
  %v1017 = vpop.xlane.xlu0 %1016
  %v1018 = vrcp.pop %v1017
  %v1019 = vmul.f32 %v1014, %v1018
  %v1020 = vmul.f32 %v1019, 0.99
  %v1021 = vadd.f32 %v1020, 0.0025
  %v1022 = vsel %vm1006, %v1021, %v999
  %1023 = vst.msk [vmem:[%s9] sm:$0xff] %vm1008, %v1022
  // Predicated region
  $region38: #{network_forward.1} parent=0 // pred_check
    _
  $region39: #{network_forward.1} parent=0 // pred_check_branch
    %1025 = sbr.rel (0) target = $region41
  $region40: #{network_forward.1} parent=0 // pred_region
    _
  $region41: #{network_forward.1} parent=0 // pred_fallthru
    _
  // Predicated region
  $region42: #{network_forward.1} parent=0 // pred_check
    _
  $region43: #{network_forward.1} parent=0 // pred_check_branch
    %1027 = sbr.rel (0) target = $region45
  $region44: #{network_forward.1} parent=0 // pred_region
    _
  $region45: #{network_forward.1} parent=0 // pred_fallthru
    _

</llo_original>
